<compile_context>
chip_gen: v7x
topology: tpu7x:2x2x1
jax: 0.10.0
libtpu: 0.0.40
codegen_flags: <defaults>
</compile_context>

<pallas_src>
import numpy as np
import jax
import jax.numpy as jnp
from jax.experimental import pallas as pl
from jax.experimental.pallas import tpu as pltpu

OUT_H = 224
OUT_W = 224

IMAGENET_MEAN = (0.485, 0.456, 0.406)
IMAGENET_STD = (0.229, 0.224, 0.225)


def _bilinear_matrix(out_size: int, in_size: int) -> np.ndarray:
    """Row-stochastic bilinear interpolation matrix (half-pixel centers), f64."""
    i = np.arange(out_size, dtype=np.float64)
    src = (i + 0.5) * (in_size / out_size) - 0.5
    src = np.clip(src, 0.0, in_size - 1)
    i0 = np.floor(src).astype(np.int64)
    i1 = np.minimum(i0 + 1, in_size - 1)
    w1 = src - i0
    w0 = 1.0 - w1
    m = np.zeros((out_size, in_size), dtype=np.float64)
    m[np.arange(out_size), i0] += w0
    m[np.arange(out_size), i1] += w1
    return m


def preprocess_kernel(scale_ref, bias_ref, x_ref, rh_ref, rwt_ref, o_ref):
    """One (image, channel) plane: bilinear resize (bf16 MXU) + fused normalize."""
    c = pl.program_id(1)
    H, W = x_ref.shape

    # Single-step uint8 -> bf16 cast (pixel values 0..255 are exact in bf16).
    x = x_ref[...].astype(jnp.bfloat16)            # (H, W)
    rh = rh_ref[...]                               # (OUT_H, H)  bf16
    rwt = rwt_ref[...]                             # (W, OUT_W)  bf16

    if W >= H:
        # Contract the wider axis first (fewer FLOPs, lane-dense intermediate).
        t = jnp.dot(x, rwt,
                    preferred_element_type=jnp.float32).astype(jnp.bfloat16)  # (H, OUT_W)
        y = jnp.dot(rh, t, preferred_element_type=jnp.float32)                # (OUT_H, OUT_W)
    else:
        # Portrait plane: contracting H first is FLOP-optimal.
        t = jnp.dot(rh, x,
                    preferred_element_type=jnp.float32).astype(jnp.bfloat16)  # (OUT_H, W)
        y = jnp.dot(t, rwt, preferred_element_type=jnp.float32)               # (OUT_H, OUT_W)

    # Fused ToTensor(/255) + Normalize epilogue: per-channel scalar FMA.
    o_ref[...] = y * scale_ref[c] + bias_ref[c]


def _vmem_limit_bytes(est: int) -> int:
    """Per-generation VMEM limit: generous headroom over the per-step estimate,
    bounded to ~78% of the chip's physical VMEM capacity."""
    cap = None
    try:
        cap = getattr(pltpu.get_tpu_info(), "vmem_capacity_bytes", None)
    except Exception:
        cap = None
    if not cap:
        cap = 64 * 2 ** 20   # conservative fallback (v7x-sized)
    return int(min(max(4 * est, 32 * 2 ** 20), 0.78 * cap))


def image_preprocess(x_uint8: jnp.ndarray,
                     mean: jnp.ndarray,
                     std: jnp.ndarray) -> jnp.ndarray:
    """x_uint8: (B, C, H, W) uint8 images -> (B, C, 224, 224) float32."""
    B, C, H, W = x_uint8.shape

    # Interpolation matrices in bf16 (MXU-native); built once per (H, W).
    rh = jnp.asarray(_bilinear_matrix(OUT_H, H), dtype=jnp.bfloat16)      # (224, H)
    rwt = jnp.asarray(_bilinear_matrix(OUT_W, W).T, dtype=jnp.bfloat16)   # (W, 224)

    # Fold ToTensor's /255 and Normalize into a single per-channel affine.
    scale = (1.0 / (255.0 * std)).astype(jnp.float32)    # (C,)
    bias = (-mean / std).astype(jnp.float32)             # (C,)

    # Per-grid-step VMEM estimate (includes the in-kernel bf16 copy and the
    # matmul intermediates that the previous version under-counted).
    t_rows, t_cols = (H, OUT_W) if W >= H else (OUT_H, W)
    est = (2 * H * W                            # uint8 input block, 2 buffers
           + H * W * 2                          # in-register bf16 copy of x
           + 2 * (OUT_H * H + W * OUT_W) * 2    # rh / rwt (bf16), 2 buffers each
           + t_rows * t_cols * (4 + 2)          # mid intermediate: f32 acc + bf16
           + OUT_H * OUT_W * 4                  # f32 result tile
           + 2 * OUT_H * OUT_W * 4)             # output block (f32), 2 buffers

    return pl.pallas_call(
        preprocess_kernel,
        out_shape=jax.ShapeDtypeStruct((B, C, OUT_H, OUT_W), jnp.float32),
        grid_spec=pltpu.PrefetchScalarGridSpec(
            num_scalar_prefetch=0,
            grid=(B, C),
            in_specs=[
                # per-channel affine (scale, bias) lives in SMEM
                pl.BlockSpec(memory_space=pltpu.MemorySpace.SMEM),
                pl.BlockSpec(memory_space=pltpu.MemorySpace.SMEM),
                # one (H, W) uint8 channel plane per grid step
                pl.BlockSpec((None, None, H, W), lambda b, c: (b, c, 0, 0)),
                # resize matrices are grid-invariant
                pl.BlockSpec((OUT_H, H), lambda b, c: (0, 0)),
                pl.BlockSpec((W, OUT_W), lambda b, c: (0, 0)),
            ],
            out_specs=pl.BlockSpec((None, None, OUT_H, OUT_W),
                                   lambda b, c: (b, c, 0, 0)),
        ),
        compiler_params=pltpu.CompilerParams(
            dimension_semantics=("parallel", "parallel"),
            vmem_limit_bytes=_vmem_limit_bytes(est)),
    )(scale, bias, x_uint8, rh, rwt)


def _reference(x_uint8, mean, std):
    """Pure-JAX f32 reference (same interpolation grid, HIGHEST precision)."""
    B, C, H, W = x_uint8.shape
    rh = jnp.asarray(_bilinear_matrix(OUT_H, H), dtype=jnp.float32)
    rwt = jnp.asarray(_bilinear_matrix(OUT_W, W).T, dtype=jnp.float32)
    x = x_uint8.astype(jnp.float32)
    y = jnp.einsum("oh,bchw,wp->bcop", rh, x, rwt,
                   precision=jax.lax.Precision.HIGHEST)
    y = y / 255.0
    return (y - mean[None, :, None, None]) / std[None, :, None, None]


if __name__ == "__main__":
    key = jax.random.PRNGKey(0)
    B, C, H, W = 2, 3, 16, 16
    x = jax.random.randint(key, (B, C, H, W), 0, 256, dtype=jnp.int32)
    x = x.astype(jnp.uint8)

    mean = jnp.asarray(IMAGENET_MEAN, dtype=jnp.float32)
    std = jnp.asarray(IMAGENET_STD, dtype=jnp.float32)

    out = jax.block_until_ready(image_preprocess(x, mean, std))
    ref = jax.block_until_ready(_reference(x, mean, std))

    assert out.shape == (B, C, OUT_H, OUT_W), out.shape
    # bf16 interpolation weights / intermediates -> loosened tolerance vs the
    # full-f32 reference (worst-case ~0.03 in normalized units for 0..255 input).
    max_err = float(jnp.max(jnp.abs(out - ref)))
    assert max_err < 5e-2, f"mismatch vs reference, max abs err = {max_err}"

    print("KERNEL_OK")
</pallas_src>

<mosaic_0001>
module attributes {stable_mosaic.version = 11 : i64} {
  func.func @preprocess_kernel(%arg0: i32, %arg1: i32, %arg2: memref<3xf32, #tpu.memory_space<smem>>, %arg3: memref<3xf32, #tpu.memory_space<smem>>, %arg4: memref<1x1x16x16xi8, #tpu.memory_space<vmem>>, %arg5: memref<224x16xbf16, #tpu.memory_space<vmem>>, %arg6: memref<16x224xbf16, #tpu.memory_space<vmem>>, %arg7: memref<1x1x224x224xf32, #tpu.memory_space<vmem>>) attributes {dimension_semantics = [#tpu.dimension_semantics<parallel>, #tpu.dimension_semantics<parallel>], iteration_bounds = array<i64: 2, 3>, scalar_prefetch = 0 : i64, scratch_operands = 0 : i64, tpu.core_type = #tpu.core_type<tc>, window_params = [{transform_indices = @transform_0, window_bounds = array<i64: 3>}, {transform_indices = @transform_1, window_bounds = array<i64: 3>}, {transform_indices = @transform_2, window_bounds = array<i64: 1, 1, 16, 16>}, {pipeline_mode = #tpu.pipeline_mode<synchronous>, transform_indices = @transform_3, window_bounds = array<i64: 224, 16>}, {pipeline_mode = #tpu.pipeline_mode<synchronous>, transform_indices = @transform_4, window_bounds = array<i64: 16, 224>}, {transform_indices = @transform_5, window_bounds = array<i64: 1, 1, 224, 224>}]} {
    %c0 = arith.constant 0 : index
    %c0_0 = arith.constant 0 : index
    %c0_1 = arith.constant 0 : index
    %c0_2 = arith.constant 0 : index
    %0 = vector.load %arg4[%c0, %c0_0, %c0_1, %c0_2] : memref<1x1x16x16xi8, #tpu.memory_space<vmem>>, vector<1x1x16x16xi8>
    %1 = vector.shape_cast %0 : vector<1x1x16x16xi8> to vector<16x16xi8>
    %2 = arith.uitofp %1 : vector<16x16xi8> to vector<16x16xbf16>
    %c0_3 = arith.constant 0 : index
    %c0_4 = arith.constant 0 : index
    %3 = vector.load %arg5[%c0_3, %c0_4] : memref<224x16xbf16, #tpu.memory_space<vmem>>, vector<224x16xbf16>
    %c0_5 = arith.constant 0 : index
    %c0_6 = arith.constant 0 : index
    %4 = vector.load %arg6[%c0_5, %c0_6] : memref<16x224xbf16, #tpu.memory_space<vmem>>, vector<16x224xbf16>
    %cst = arith.constant dense<0.000000e+00> : vector<16x224xf32>
    %5 = tpu.matmul %2, %4, %cst {dimension_numbers = #tpu.dot_dimension_numbers<[1], [0], [0], [1], [0, 0, 1, 1], [], []>} : vector<16x16xbf16>, vector<16x224xbf16>, vector<16x224xf32> -> vector<16x224xf32>
    %6 = arith.truncf %5 : vector<16x224xf32> to vector<16x224xbf16>
    %cst_7 = arith.constant dense<0.000000e+00> : vector<224x224xf32>
    %7 = tpu.matmul %3, %6, %cst_7 {dimension_numbers = #tpu.dot_dimension_numbers<[1], [0], [0], [1], [0, 0, 1, 1], [], []>} : vector<224x16xbf16>, vector<16x224xbf16>, vector<224x224xf32> -> vector<224x224xf32>
    %8 = arith.index_cast %arg1 : i32 to index
    %9 = memref.load %arg2[%8] : memref<3xf32, #tpu.memory_space<smem>>
    %10 = vector.broadcast %9 : f32 to vector<224x224xf32>
    %11 = arith.mulf %7, %10 : vector<224x224xf32>
    %12 = arith.index_cast %arg1 : i32 to index
    %13 = memref.load %arg3[%12] : memref<3xf32, #tpu.memory_space<smem>>
    %14 = vector.broadcast %13 : f32 to vector<224x224xf32>
    %15 = arith.addf %11, %14 : vector<224x224xf32>
    %c0_8 = arith.constant 0 : index
    %c0_9 = arith.constant 0 : index
    %c0_10 = arith.constant 0 : index
    %c0_11 = arith.constant 0 : index
    %16 = vector.load %arg7[%c0_8, %c0_9, %c0_10, %c0_11] : memref<1x1x224x224xf32, #tpu.memory_space<vmem>>, vector<1x1x224x224xf32>
    %17 = vector.shape_cast %16 : vector<1x1x224x224xf32> to vector<224x224xf32>
    %18 = vector.shape_cast %15 : vector<224x224xf32> to vector<1x1x224x224xf32>
    tpu.vector_store %arg7[%c0_8, %c0_9, %c0_10, %c0_11], %18 {strides = array<i32>} : memref<1x1x224x224xf32, #tpu.memory_space<vmem>>, vector<1x1x224x224xf32>,
    return
  }
  func.func @transform_0(%arg0: i32, %arg1: i32) -> i32 {
    %c0_i32 = arith.constant 0 : i32
    %c0_i32_0 = arith.constant 0 : i32
    return %c0_i32 : i32
  }
  func.func @transform_1(%arg0: i32, %arg1: i32) -> i32 {
    %c0_i32 = arith.constant 0 : i32
    %c0_i32_0 = arith.constant 0 : i32
    return %c0_i32 : i32
  }
  func.func @transform_2(%arg0: i32, %arg1: i32) -> (i32, i32, i32, i32) {
    %c0_i32 = arith.constant 0 : i32
    %c0_i32_0 = arith.constant 0 : i32
    %c0_i32_1 = arith.constant 0 : i32
    return %arg0, %arg1, %c0_i32, %c0_i32_0 : i32, i32, i32, i32
  }
  func.func @transform_3(%arg0: i32, %arg1: i32) -> (i32, i32) {
    %c0_i32 = arith.constant 0 : i32
    %c0_i32_0 = arith.constant 0 : i32
    %c0_i32_1 = arith.constant 0 : i32
    return %c0_i32, %c0_i32_0 : i32, i32
  }
  func.func @transform_4(%arg0: i32, %arg1: i32) -> (i32, i32) {
    %c0_i32 = arith.constant 0 : i32
    %c0_i32_0 = arith.constant 0 : i32
    %c0_i32_1 = arith.constant 0 : i32
    return %c0_i32, %c0_i32_0 : i32, i32
  }
  func.func @transform_5(%arg0: i32, %arg1: i32) -> (i32, i32, i32, i32) {
    %c0_i32 = arith.constant 0 : i32
    %c0_i32_0 = arith.constant 0 : i32
    %c0_i32_1 = arith.constant 0 : i32
    return %arg0, %arg1, %c0_i32, %c0_i32_0 : i32, i32, i32, i32
  }
}

</mosaic_0001>

<llo_original>
// kernel: tpu_custom_call.1
$region0: #{tpu_custom_call.1}
  #allocation0 [shape = 'u32[]', space=smem, size = 0x4, offset = 0x4, fixed_abs, tag = 'smem constant byte address 0x4 - core index']
  #allocation1 [shape = 'u32[144,128]{1,0:T(1,128)}', space=vmem, size = 0x12000, scoped, tag = 'internal scratch']
  %s0 = inlined_call_operand.hbm [shape: f32[3], index: 0, kind: input, shape index: {}]
  %s1 = inlined_call_operand.hbm [shape: f32[3], index: 1, kind: input, shape index: {}]
  %s2 = inlined_call_operand.hbm [shape: u8[2,3,16,16], index: 2, kind: input, shape index: {}]
  %s3 = inlined_call_operand.vmem [shape: bf16[224,16], index: 3, kind: input, shape index: {}]
  %s4 = inlined_call_operand.hbm [shape: bf16[16,224], index: 4, kind: input, shape index: {}]
  %s5 = inlined_call_operand.hbm [shape: f32[2,3,224,224], index: 5, kind: output, shape index: {}]
  %s6 = sld [smem:[#allocation0]]
  $region69: #{tpu_custom_call.1} parent=0
    _
  %s8 = ssub.s32 1, %s6
  %s9 = scalar_select 0, %s8, %s6
  $region1: #{tpu_custom_call.1} parent=0
    #allocation2 [shape = 'u8[512]{0}', space=smem, size = 0x200, scoped, tag = 'input window, operand 0, single buffered']
    #allocation3 [shape = 's32[2]{0}', space=sflag, size = 0x8, scoped, tag = 'scoped memory for tpu_custom_call.1']
    #allocation4 [shape = 's32[2]{0}', space=sflag, size = 0x8, scoped, tag = 'scoped memory for tpu_custom_call.1']
    #allocation5 [shape = 's32[2]{0}', space=sflag, size = 0x8, scoped, tag = 'scoped memory for tpu_custom_call.1']
    #allocation6 [shape = 'u8[512]{0}', space=smem, size = 0x200, scoped, tag = 'input window, operand 1, single buffered']
    #allocation7 [shape = 's32[1]{0}', space=sflag, size = 0x4, scoped, tag = 'scoped memory for tpu_custom_call.1']
    #allocation8 [shape = 'u8[4096]{0}', space=vmem, size = 0x1000, scoped, tag = 'input window, operand 2']
    #allocation9 [shape = 'u8[8192]{0}', space=vmem, size = 0x2000, scoped, tag = 'input window, operand 4, single buffered']
    #allocation10 [shape = 's32[1]{0}', space=sflag, size = 0x4, scoped, tag = 'scoped memory for tpu_custom_call.1']
    #allocation11 [shape = 'u8[458752]{0}', space=vmem, size = 0x70000, scoped, tag = 'output window, operand 0']
    %10 = vsyncpa [#allocation5], 0
    %11 = vsyncpa [#allocation7], 0
    %12 = vsyncpa [#allocation3], 0
    %s13 = scalar_lea.sflag [#allocation3], 1
    %14 = vsyncpa %s13, 0
    %15 = vsyncpa [#allocation10], 0
    %16 = vsyncpa [#allocation4], 0
    %s17 = scalar_lea.sflag [#allocation4], 1
    %18 = vsyncpa %s17, 0
    loop: start=0, step=1, limit=8
    $region2: #{tpu_custom_call.1} parent=1 // loop_pre_header
      _
    $region3: #{tpu_custom_call.1} parent=1 // loop_header
      %s20 = sphi 0, %s24
      %p21 = scmp.ge.s32.totalorder %s20, 8
      %s27 = sphi 0, %s39
      %s28 = sphi 0, %s35
      %s29 = sphi 0, %s27
      %s30 = sphi 0, %s28
      %s31 = sphi 0, %s29
      %s32 = sphi 0, %s30
      %s40 = sphi 0, %s40
      %s42 = sphi 0, %s40
      %s43 = sphi 0, %s42
      %s57 = sphi 0, %s43
      %s61 = sphi 0, %s61
      %s63 = sphi 0, %s61
      %s64 = sphi 0, %s63
      %s78 = sphi 0, %s64
      %s86 = sphi 0, %s88
      %s89 = sphi 0, %s86
      %s90 = sphi 0, %s89
      %s106 = sphi 0, %s90
      %s110 = sphi 0, %s110
      %s112 = sphi 0, %s110
      %s113 = sphi 0, %s112
      %s127 = sphi 0, %s113
      %s131 = sphi 0, %s131
      %s133 = sphi 0, %s131
      %s134 = sphi 0, %s133
      %s148 = sphi 0, %s134
      %s156 = sphi 0, %s158
      %s159 = sphi 0, %s156
      %s160 = sphi 0, %s159
      %s176 = sphi 0, %s160
    $region4: #{tpu_custom_call.1} parent=1 // loop_header_branch
      %23 = sbr.rel (%p21) target = $region8
    $region5: #{tpu_custom_call.1} parent=1 // loop_body
      %s25 = ssub.s32 %s20, 1
      %s26 = ssub.s32 %s20, 2
      %s33 = sadd.s32 1, %s28
      %p34 = scmp.ge.s32.totalorder %s33, 3
      %s35 = scalar_select %p34, 0, %s33
      %s36 = sadd.s32 1, %s27
      %s37 = scalar_select %p34, %s36, %s27
      %p38 = scmp.ge.s32.totalorder %s37, 2
      %s39 = scalar_select %p38, 0, %s37
      %s41 = sadd.s32 %s40, 1
      %p44 = scmp.eq.s32.totalorder %s20, 5
      %p45 = scmp.ne.s32.totalorder %s40, %s42
      %p46 = scmp.eq.s32.totalorder %s20, 0
      %p47 = por %p45, %p46
      %p48 = scmp.ne.s32.totalorder %s40, %s42
      %p49 = scmp.eq.s32.totalorder %s25, 5
      %p50 = por %p48, %p49
      %p51 = scmp.ne.s32.totalorder %s42, %s43
      %p52 = scmp.eq.s32.totalorder %s25, 0
      %p53 = por %p51, %p52
      %p54 = scmp.ne.s32.totalorder %s42, %s43
      %p55 = scmp.eq.s32.totalorder %s26, 5
      %p56 = por %p54, %p55
      %p58 = scmp.ne.s32.totalorder %s43, %s57
      %p59 = scmp.eq.s32.totalorder %s26, 0
      %p60 = por %p58, %p59
      %s62 = sadd.s32 %s61, 1
      %p65 = scmp.eq.s32.totalorder %s20, 5
      %p66 = scmp.ne.s32.totalorder %s61, %s63
      %p67 = scmp.eq.s32.totalorder %s20, 0
      %p68 = por %p66, %p67
      %p69 = scmp.ne.s32.totalorder %s61, %s63
      %p70 = scmp.eq.s32.totalorder %s25, 5
      %p71 = por %p69, %p70
      %p72 = scmp.ne.s32.totalorder %s63, %s64
      %p73 = scmp.eq.s32.totalorder %s25, 0
      %p74 = por %p72, %p73
      %p75 = scmp.ne.s32.totalorder %s63, %s64
      %p76 = scmp.eq.s32.totalorder %s26, 5
      %p77 = por %p75, %p76
      %p79 = scmp.ne.s32.totalorder %s64, %s78
      %p80 = scmp.eq.s32.totalorder %s26, 0
      %p81 = por %p79, %p80
      %s82 = ssub.s32 %s27, %s39
      %s83 = ssub.s32 %s28, %s35
      %s84 = sor.u32 %s82, %s83
      %p85 = scmp.eq.s32.totalorder %s84, 0
      %s87 = sadd.s32 %s86, 1
      %s88 = scalar_select %p85, %s86, %s87
      %p91 = pneg %p85
      %p92 = scmp.eq.s32.totalorder %s20, 5
      %p93 = por %p91, %p92
      %p94 = scmp.ne.s32.totalorder %s86, %s89
      %p95 = scmp.eq.s32.totalorder %s20, 0
      %p96 = por %p94, %p95
      %p97 = scmp.ne.s32.totalorder %s86, %s89
      %p98 = scmp.eq.s32.totalorder %s25, 5
      %p99 = por %p97, %p98
      %p100 = scmp.ne.s32.totalorder %s89, %s90
      %p101 = scmp.eq.s32.totalorder %s25, 0
      %p102 = por %p100, %p101
      %p103 = scmp.ne.s32.totalorder %s89, %s90
      %p104 = scmp.eq.s32.totalorder %s26, 5
      %p105 = por %p103, %p104
      %p107 = scmp.ne.s32.totalorder %s90, %s106
      %p108 = scmp.eq.s32.totalorder %s26, 0
      %p109 = por %p107, %p108
      %s111 = sadd.s32 %s110, 1
      %p114 = scmp.eq.s32.totalorder %s20, 5
      %p115 = scmp.ne.s32.totalorder %s110, %s112
      %p116 = scmp.eq.s32.totalorder %s20, 0
      %p117 = por %p115, %p116
      %p118 = scmp.ne.s32.totalorder %s110, %s112
      %p119 = scmp.eq.s32.totalorder %s25, 5
      %p120 = por %p118, %p119
      %p121 = scmp.ne.s32.totalorder %s112, %s113
      %p122 = scmp.eq.s32.totalorder %s25, 0
      %p123 = por %p121, %p122
      %p124 = scmp.ne.s32.totalorder %s112, %s113
      %p125 = scmp.eq.s32.totalorder %s26, 5
      %p126 = por %p124, %p125
      %p128 = scmp.ne.s32.totalorder %s113, %s127
      %p129 = scmp.eq.s32.totalorder %s26, 0
      %p130 = por %p128, %p129
      %s132 = sadd.s32 %s131, 1
      %p135 = scmp.eq.s32.totalorder %s20, 5
      %p136 = scmp.ne.s32.totalorder %s131, %s133
      %p137 = scmp.eq.s32.totalorder %s20, 0
      %p138 = por %p136, %p137
      %p139 = scmp.ne.s32.totalorder %s131, %s133
      %p140 = scmp.eq.s32.totalorder %s25, 5
      %p141 = por %p139, %p140
      %p142 = scmp.ne.s32.totalorder %s133, %s134
      %p143 = scmp.eq.s32.totalorder %s25, 0
      %p144 = por %p142, %p143
      %p145 = scmp.ne.s32.totalorder %s133, %s134
      %p146 = scmp.eq.s32.totalorder %s26, 5
      %p147 = por %p145, %p146
      %p149 = scmp.ne.s32.totalorder %s134, %s148
      %p150 = scmp.eq.s32.totalorder %s26, 0
      %p151 = por %p149, %p150
      %s152 = ssub.s32 %s27, %s39
      %s153 = ssub.s32 %s28, %s35
      %s154 = sor.u32 %s152, %s153
      %p155 = scmp.eq.s32.totalorder %s154, 0
      %s157 = sadd.s32 %s156, 1
      %s158 = scalar_select %p155, %s156, %s157
      %p161 = pneg %p155
      %p162 = scmp.eq.s32.totalorder %s20, 5
      %p163 = por %p161, %p162
      %p164 = scmp.ne.s32.totalorder %s156, %s159
      %p165 = scmp.eq.s32.totalorder %s20, 0
      %p166 = por %p164, %p165
      %p167 = scmp.ne.s32.totalorder %s156, %s159
      %p168 = scmp.eq.s32.totalorder %s25, 5
      %p169 = por %p167, %p168
      %p170 = scmp.ne.s32.totalorder %s159, %s160
      %p171 = scmp.eq.s32.totalorder %s25, 0
      %p172 = por %p170, %p171
      %p173 = scmp.ne.s32.totalorder %s159, %s160
      %p174 = scmp.eq.s32.totalorder %s26, 5
      %p175 = por %p173, %p174
      %p177 = scmp.ne.s32.totalorder %s160, %s176
      %p178 = scmp.eq.s32.totalorder %s26, 0
      %p179 = por %p177, %p178
      %p180 = scmp.le.s32.totalorder 1, %s20
      %p181 = scmp.lt.s32.totalorder %s20, 7
      %p182 = pnand %p180, %p181
      %p183 = pneg %p182
      // Predicated region
      $region9: #{tpu_custom_call.1} parent=5 // pred_check
        _
      $region10: #{tpu_custom_call.1} parent=5 // pred_check_branch
        %185 = sbr.rel (%p182) target = $region12
      $region11: #{tpu_custom_call.1} parent=5 // pred_region
        %s186 = ssub.s32 %s20, 1
        // Predicated region
        $region13: #{tpu_custom_call.1} parent=11 // pred_check
          %p187 = pneg %p53
        $region14: #{tpu_custom_call.1} parent=11 // pred_check_branch
          %189 = sbr.rel (%p187) target = $region16
        $region15: #{tpu_custom_call.1} parent=11 // pred_region
          %s191 = ssub.s32 16, 16
          %192 = vsyncadd [#allocation5], %s191
          %195 = dma.hbm_to_smem %s0, 16, [#allocation2], [#allocation5]
        $region16: #{tpu_custom_call.1} parent=11 // pred_fallthru
          _
        // Predicated region
        $region17: #{tpu_custom_call.1} parent=11 // pred_check
          %p196 = pneg %p74
        $region18: #{tpu_custom_call.1} parent=11 // pred_check_branch
          %198 = sbr.rel (%p196) target = $region20
        $region19: #{tpu_custom_call.1} parent=11 // pred_region
          %s200 = ssub.s32 16, 16
          %201 = vsyncadd [#allocation7], %s200
          %204 = dma.hbm_to_smem %s1, 16, [#allocation6], [#allocation7]
        $region20: #{tpu_custom_call.1} parent=11 // pred_fallthru
          _
        // Predicated region
        $region21: #{tpu_custom_call.1} parent=11 // pred_check
          %p205 = pneg %p123
        $region22: #{tpu_custom_call.1} parent=11 // pred_check_branch
          %207 = sbr.rel (%p205) target = $region24
        $region23: #{tpu_custom_call.1} parent=11 // pred_region
          _
        $region24: #{tpu_custom_call.1} parent=11 // pred_fallthru
          _
        // Predicated region
        $region25: #{tpu_custom_call.1} parent=11 // pred_check
          %p208 = pneg %p144
        $region26: #{tpu_custom_call.1} parent=11 // pred_check_branch
          %210 = sbr.rel (%p208) target = $region28
        $region27: #{tpu_custom_call.1} parent=11 // pred_region
          %s212 = ssub.s32 256, 256
          %213 = vsyncadd [#allocation10], %s212
          %s214 = sshll.u32 [#allocation9], 4
          %s215 = int_to_ptr.vmem [resolvable:$true] %s214
          %220 = dma.hbm_to_vmem [thread:$0]  %s4, 256, %s215, [#allocation10], 128, 128, 8
        $region28: #{tpu_custom_call.1} parent=11 // pred_fallthru
          _
      $region12: #{tpu_custom_call.1} parent=5 // pred_fallthru
        _
      %p221 = scmp.lt.s32.totalorder %s20, 6
      // Predicated region
      $region29: #{tpu_custom_call.1} parent=5 // pred_check
        %p222 = pneg %p221
      $region30: #{tpu_custom_call.1} parent=5 // pred_check_branch
        %224 = sbr.rel (%p222) target = $region32
      $region31: #{tpu_custom_call.1} parent=5 // pred_region
        // Predicated region
        $region33: #{tpu_custom_call.1} parent=31 // pred_check
          %p225 = pneg %p96
        $region34: #{tpu_custom_call.1} parent=31 // pred_check_branch
          %227 = sbr.rel (%p225) target = $region36
        $region35: #{tpu_custom_call.1} parent=31 // pred_region
          %s228 = sand.u32 %s86, 1
          %s229 = scalar_lea.sflag [#allocation3], %s228
          %s230 = sand.u32 %s86, 1
          %s231 = smul.addr %s230, 4
          %s232 = scalar_lea.vmem [#allocation8], %s231
          %s234 = ssub.s32 64, 64
          %235 = vsyncadd %s229, %s234
          %s236 = smul.addr %s28, 2
          %s237 = smul.addr %s27, 6
          %s238 = sadd.s32 %s236, %s237
          %s239 = smul.addr %s238, 32
          %s240 = scalar_lea.hbm %s2, %s239
          %s241 = sshll.u32 %s232, 4
          %s242 = int_to_ptr.vmem [resolvable:$true] %s241
          %247 = dma.hbm_to_vmem [thread:$0]  %s240, 64, %s242, %s229, 32, 32, 2
        $region36: #{tpu_custom_call.1} parent=31 // pred_fallthru
          _
      $region32: #{tpu_custom_call.1} parent=5 // pred_fallthru
        _
      %p248 = scmp.le.s32.totalorder 1, %s20
      %p249 = scmp.lt.s32.totalorder %s20, 7
      %p250 = pnand %p248, %p249
      %p251 = pneg %p250
      // Predicated region
      $region37: #{tpu_custom_call.1} parent=5 // pred_check
        _
      $region38: #{tpu_custom_call.1} parent=5 // pred_check_branch
        %253 = sbr.rel (%p250) target = $region40
      $region39: #{tpu_custom_call.1} parent=5 // pred_region
        %s254 = ssub.s32 %s20, 1
        // Predicated region
        $region41: #{tpu_custom_call.1} parent=39 // pred_check
          %p255 = pneg %p53
        $region42: #{tpu_custom_call.1} parent=39 // pred_check_branch
          %257 = sbr.rel (%p255) target = $region44
        $region43: #{tpu_custom_call.1} parent=39 // pred_region
          %258 = dma.done [#allocation5], 16
        $region44: #{tpu_custom_call.1} parent=39 // pred_fallthru
          _
        // Predicated region
        $region45: #{tpu_custom_call.1} parent=39 // pred_check
          %p259 = pneg %p74
        $region46: #{tpu_custom_call.1} parent=39 // pred_check_branch
          %261 = sbr.rel (%p259) target = $region48
        $region47: #{tpu_custom_call.1} parent=39 // pred_region
          %262 = dma.done [#allocation7], 16
        $region48: #{tpu_custom_call.1} parent=39 // pred_fallthru
          _
        %s263 = sand.u32 %s89, 1
        %s264 = scalar_lea.sflag [#allocation3], %s263
        %s265 = sand.u32 %s89, 1
        %s266 = smul.addr %s265, 4
        %s267 = scalar_lea.vmem [#allocation8], %s266
        // Predicated region
        $region49: #{tpu_custom_call.1} parent=39 // pred_check
          %p268 = pneg %p102
        $region50: #{tpu_custom_call.1} parent=39 // pred_check_branch
          %270 = sbr.rel (%p268) target = $region52
        $region51: #{tpu_custom_call.1} parent=39 // pred_region
          %271 = dma.done %s264, 64
        $region52: #{tpu_custom_call.1} parent=39 // pred_fallthru
          _
        // Predicated region
        $region53: #{tpu_custom_call.1} parent=39 // pred_check
          %p272 = pneg %p144
        $region54: #{tpu_custom_call.1} parent=39 // pred_check_branch
          %274 = sbr.rel (%p272) target = $region56
        $region55: #{tpu_custom_call.1} parent=39 // pred_region
          %275 = dma.done [#allocation10], 256
        $region56: #{tpu_custom_call.1} parent=39 // pred_fallthru
          _
        %276 = sfence
        %p277 = pneg %p53
        %p278 = pneg %p50
        %p279 = pneg %p74
        %p280 = pneg %p71
        %s281 = sand.u32 %s89, 1
        %s282 = scalar_lea.sflag [#allocation3], %s281
        %s283 = sand.u32 %s89, 1
        %s284 = smul.addr %s283, 4
        %s285 = scalar_lea.vmem [#allocation8], %s284
        %p286 = pneg %p102
        %p287 = pneg %p99
        %p288 = pneg %p123
        %p289 = pneg %p120
        %p290 = pneg %p144
        %p291 = pneg %p141
        %p292 = pneg %p172
        %p293 = pneg %p169
        %s294 = sand.u32 %s159, 1
        %s295 = scalar_lea.sflag [#allocation4], %s294
        %s296 = sand.u32 %s159, 1
        %s297 = smul.addr %s296, 448
        %s298 = scalar_lea.vmem [#allocation11], %s297
        %v300 = vld [vmem:[%s267] sm:$0x3]
        %v301 = vld [vmem:[%s267 + $0x2] sm:$0x3]
        %v302 = vunpack.c.l.u8.bf16 %v300
        %v303 = vunpack.c.l.u8.bf16 %v301
        %v304 = vld [vmem:[%s3] sm:$0xf]
        %v305 = vld [vmem:[%s3 + $0x4] sm:$0xf]
        %v306 = vld [vmem:[%s3 + $0x8] sm:$0xf]
        %v307 = vld [vmem:[%s3 + $0xc] sm:$0xf]
        %v308 = vld [vmem:[%s3 + $0x10] sm:$0xf]
        %v309 = vld [vmem:[%s3 + $0x14] sm:$0xf]
        %v310 = vld [vmem:[%s3 + $0x18] sm:$0xf]
        %v311 = vld [vmem:[%s3 + $0x1c] sm:$0xf]
        %v312 = vld [vmem:[%s3 + $0x20] sm:$0xf]
        %v313 = vld [vmem:[%s3 + $0x24] sm:$0xf]
        %v314 = vld [vmem:[%s3 + $0x28] sm:$0xf]
        %v315 = vld [vmem:[%s3 + $0x2c] sm:$0xf]
        %v316 = vld [vmem:[%s3 + $0x30] sm:$0xf]
        %v317 = vld [vmem:[%s3 + $0x34] sm:$0xf]
        %v318 = vld [vmem:[%s3 + $0x38] sm:$0xf]
        %v319 = vld [vmem:[%s3 + $0x3c] sm:$0xf]
        %v320 = vld [vmem:[%s3 + $0x40] sm:$0xf]
        %v321 = vld [vmem:[%s3 + $0x44] sm:$0xf]
        %v322 = vld [vmem:[%s3 + $0x48] sm:$0xf]
        %v323 = vld [vmem:[%s3 + $0x4c] sm:$0xf]
        %v324 = vld [vmem:[%s3 + $0x50] sm:$0xf]
        %v325 = vld [vmem:[%s3 + $0x54] sm:$0xf]
        %v326 = vld [vmem:[%s3 + $0x58] sm:$0xf]
        %v327 = vld [vmem:[%s3 + $0x5c] sm:$0xf]
        %v328 = vld [vmem:[%s3 + $0x60] sm:$0xf]
        %v329 = vld [vmem:[%s3 + $0x64] sm:$0xf]
        %v330 = vld [vmem:[%s3 + $0x68] sm:$0xf]
        %v331 = vld [vmem:[%s3 + $0x6c] sm:$0xf]
        %v332 = vld [vmem:[#allocation9] sm:$0xff]
        %v333 = vld [vmem:[#allocation9 + $0x8] sm:$0xff]
        %v336 = vunpack.c.l.b16 %v302
        %v337 = vunpack.c.l.b16 %v303
        %v338 = vpack.c.b16 %v337, %v336
        %v341 = vunpack.c.l.b16 %v332
        %v342 = vunpack.c.h.b16 %v332
        %v343 = vunpack.c.l.b16 %v333
        %v344 = vunpack.c.h.b16 %v333
        %v345 = vpack.c.b16 %v343, %v341
        %v346 = vpack.c.b16 %v344, %v342
        %vm349 = vcmask 130048
        %v351 = vsel %vm349, %v338, 0
        %353 = vmatprep.subr.bf16.mxu0 %v346
        %354 = vmatpush1.bf16.msra.mxu0 %v345
        %355 = vmatprep.subr.bf16.mxu0 0
        %356 = vmatpush1.bf16.msra.mxu0 0
        %357 = vmatprep.subr.bf16.mxu0 0
        %358 = vmatpush1.bf16.msra.mxu0 0
        %359 = vmatprep.subr.bf16.mxu0 0
        %360 = vmatpush1.bf16.msra.mxu0 0
        %361 = vmatprep.subr.bf16.mxu0 0
        %362 = vmatpush1.bf16.msra.mxu0 0
        %363 = vmatprep.subr.bf16.mxu0 0
        %364 = vmatpush1.bf16.msra.mxu0 0
        %365 = vmatprep.subr.bf16.mxu0 0
        %366 = vmatpush1.bf16.msra.mxu0 0
        %367 = vmatprep.subr.bf16.mxu0 0
        %368 = vmatpush1.bf16.msra.mxu0 0
        %369 = vmatprep.subr.bf16.mxu0 0
        %370 = vmatpush1.bf16.msra.mxu0 0
        %371 = vmatprep.subr.bf16.mxu0 0
        %372 = vmatpush1.bf16.msra.mxu0 0
        %373 = vmatprep.subr.bf16.mxu0 0
        %374 = vmatpush1.bf16.msra.mxu0 0
        %375 = vmatprep.subr.bf16.mxu0 0
        %376 = vmatpush1.bf16.msra.mxu0 0
        %377 = vmatprep.subr.bf16.mxu0 0
        %378 = vmatpush1.bf16.msra.mxu0 0
        %379 = vmatprep.subr.bf16.mxu0 0
        %380 = vmatpush1.bf16.msra.mxu0 0
        %381 = vmatprep.subr.bf16.mxu0 0
        %382 = vmatpush1.bf16.msra.mxu0 0
        %383 = vmatprep.subr.bf16.mxu0 0
        %384 = vmatpush1.bf16.msra.mxu0 0
        %385 = vmatprep.mubr.bf16.mxu0 0
        %386 = vmatmul.mubr.bf16.gmra.mrb[0].mxu0 %v351
        %v387 = vpop.f32.mrb[0].mxu0
        %v388 = vadd.f32 0.0, %v387
        %v389 = vpop.f32.mrb[0].mxu0
        %v390 = vadd.f32 0.0, %v389
        %v391 = vpop.f32.mrb[0].mxu0
        %v392 = vadd.f32 0.0, %v391
        %v393 = vpop.f32.mrb[0].mxu0
        %v394 = vadd.f32 0.0, %v393
        %395 = vdwg.mxu0
        %v396 = vpack.c.bf16 %v392, %v388
        %v397 = vpack.c.bf16 %v394, %v390
        %v426 = vunpack.c.l.b16 %v304
        %v427 = vunpack.c.l.b16 %v305
        %v428 = vunpack.c.l.b16 %v306
        %v429 = vunpack.c.l.b16 %v307
        %v430 = vunpack.c.l.b16 %v308
        %v431 = vunpack.c.l.b16 %v309
        %v432 = vunpack.c.l.b16 %v310
        %v433 = vunpack.c.l.b16 %v311
        %v434 = vunpack.c.l.b16 %v312
        %v435 = vunpack.c.l.b16 %v313
        %v436 = vunpack.c.l.b16 %v314
        %v437 = vunpack.c.l.b16 %v315
        %v438 = vunpack.c.l.b16 %v316
        %v439 = vunpack.c.l.b16 %v317
        %v440 = vunpack.c.l.b16 %v318
        %v441 = vunpack.c.l.b16 %v319
        %v442 = vunpack.c.l.b16 %v320
        %v443 = vunpack.c.l.b16 %v321
        %v444 = vunpack.c.l.b16 %v322
        %v445 = vunpack.c.l.b16 %v323
        %v446 = vunpack.c.l.b16 %v324
        %v447 = vunpack.c.l.b16 %v325
        %v448 = vunpack.c.l.b16 %v326
        %v449 = vunpack.c.l.b16 %v327
        %v450 = vunpack.c.l.b16 %v328
        %v451 = vunpack.c.l.b16 %v329
        %v452 = vunpack.c.l.b16 %v330
        %v453 = vunpack.c.l.b16 %v331
        %v454 = vpack.c.b16 %v427, %v426
        %v455 = vpack.c.b16 %v429, %v428
        %v456 = vpack.c.b16 %v431, %v430
        %v457 = vpack.c.b16 %v433, %v432
        %v458 = vpack.c.b16 %v435, %v434
        %v459 = vpack.c.b16 %v437, %v436
        %v460 = vpack.c.b16 %v439, %v438
        %v461 = vpack.c.b16 %v441, %v440
        %v462 = vpack.c.b16 %v443, %v442
        %v463 = vpack.c.b16 %v445, %v444
        %v464 = vpack.c.b16 %v447, %v446
        %v465 = vpack.c.b16 %v449, %v448
        %v466 = vpack.c.b16 %v451, %v450
        %v467 = vpack.c.b16 %v453, %v452
        %v469 = vsel %vm349, %v454, 0
        %v472 = vsel %vm349, %v455, 0
        %v475 = vsel %vm349, %v456, 0
        %v478 = vsel %vm349, %v457, 0
        %v481 = vsel %vm349, %v458, 0
        %v484 = vsel %vm349, %v459, 0
        %v487 = vsel %vm349, %v460, 0
        %v490 = vsel %vm349, %v461, 0
        %v493 = vsel %vm349, %v462, 0
        %v496 = vsel %vm349, %v463, 0
        %v499 = vsel %vm349, %v464, 0
        %v502 = vsel %vm349, %v465, 0
        %v505 = vsel %vm349, %v466, 0
        %v508 = vsel %vm349, %v467, 0
        %510 = vmatprep.subr.bf16.mxu0 %v397
        %511 = vmatpush1.bf16.msra.mxu0 %v396
        %512 = vmatprep.subr.bf16.mxu0 0
        %513 = vmatpush1.bf16.msra.mxu0 0
        %514 = vmatprep.subr.bf16.mxu0 0
        %515 = vmatpush1.bf16.msra.mxu0 0
        %516 = vmatprep.subr.bf16.mxu0 0
        %517 = vmatpush1.bf16.msra.mxu0 0
        %518 = vmatprep.subr.bf16.mxu0 0
        %519 = vmatpush1.bf16.msra.mxu0 0
        %520 = vmatprep.subr.bf16.mxu0 0
        %521 = vmatpush1.bf16.msra.mxu0 0
        %522 = vmatprep.subr.bf16.mxu0 0
        %523 = vmatpush1.bf16.msra.mxu0 0
        %524 = vmatprep.subr.bf16.mxu0 0
        %525 = vmatpush1.bf16.msra.mxu0 0
        %526 = vmatprep.subr.bf16.mxu0 0
        %527 = vmatpush1.bf16.msra.mxu0 0
        %528 = vmatprep.subr.bf16.mxu0 0
        %529 = vmatpush1.bf16.msra.mxu0 0
        %530 = vmatprep.subr.bf16.mxu0 0
        %531 = vmatpush1.bf16.msra.mxu0 0
        %532 = vmatprep.subr.bf16.mxu0 0
        %533 = vmatpush1.bf16.msra.mxu0 0
        %534 = vmatprep.subr.bf16.mxu0 0
        %535 = vmatpush1.bf16.msra.mxu0 0
        %536 = vmatprep.subr.bf16.mxu0 0
        %537 = vmatpush1.bf16.msra.mxu0 0
        %538 = vmatprep.subr.bf16.mxu0 0
        %539 = vmatpush1.bf16.msra.mxu0 0
        %540 = vmatprep.subr.bf16.mxu0 0
        %541 = vmatpush1.bf16.msra.mxu0 0
        %542 = vmatprep.mubr.bf16.mxu0 0
        %543 = vmatmul.mubr.bf16.gmra.mrb[0].mxu0 %v469
        %v544 = vpop.f32.mrb[0].mxu0
        %v545 = vadd.f32 0.0, %v544
        %v546 = vpop.f32.mrb[0].mxu0
        %v547 = vadd.f32 0.0, %v546
        %v548 = vpop.f32.mrb[0].mxu0
        %v549 = vadd.f32 0.0, %v548
        %v550 = vpop.f32.mrb[0].mxu0
        %v551 = vadd.f32 0.0, %v550
        %552 = vmatprep.mubr.bf16.mxu0 0
        %553 = vmatmul.mubr.bf16.gmra.mrb[0].mxu0 %v472
        %v554 = vpop.f32.mrb[0].mxu0
        %v555 = vadd.f32 0.0, %v554
        %v556 = vpop.f32.mrb[0].mxu0
        %v557 = vadd.f32 0.0, %v556
        %v558 = vpop.f32.mrb[0].mxu0
        %v559 = vadd.f32 0.0, %v558
        %v560 = vpop.f32.mrb[0].mxu0
        %v561 = vadd.f32 0.0, %v560
        %562 = vmatprep.mubr.bf16.mxu0 0
        %563 = vmatmul.mubr.bf16.gmra.mrb[0].mxu0 %v475
        %v564 = vpop.f32.mrb[0].mxu0
        %v565 = vadd.f32 0.0, %v564
        %v566 = vpop.f32.mrb[0].mxu0
        %v567 = vadd.f32 0.0, %v566
        %v568 = vpop.f32.mrb[0].mxu0
        %v569 = vadd.f32 0.0, %v568
        %v570 = vpop.f32.mrb[0].mxu0
        %v571 = vadd.f32 0.0, %v570
        %572 = vmatprep.mubr.bf16.mxu0 0
        %573 = vmatmul.mubr.bf16.gmra.mrb[0].mxu0 %v478
        %v574 = vpop.f32.mrb[0].mxu0
        %v575 = vadd.f32 0.0, %v574
        %v576 = vpop.f32.mrb[0].mxu0
        %v577 = vadd.f32 0.0, %v576
        %v578 = vpop.f32.mrb[0].mxu0
        %v579 = vadd.f32 0.0, %v578
        %v580 = vpop.f32.mrb[0].mxu0
        %v581 = vadd.f32 0.0, %v580
        %582 = vmatprep.mubr.bf16.mxu0 0
        %583 = vmatmul.mubr.bf16.gmra.mrb[0].mxu0 %v481
        %v584 = vpop.f32.mrb[0].mxu0
        %v585 = vadd.f32 0.0, %v584
        %v586 = vpop.f32.mrb[0].mxu0
        %v587 = vadd.f32 0.0, %v586
        %v588 = vpop.f32.mrb[0].mxu0
        %v589 = vadd.f32 0.0, %v588
        %v590 = vpop.f32.mrb[0].mxu0
        %v591 = vadd.f32 0.0, %v590
        %592 = vmatprep.mubr.bf16.mxu0 0
        %593 = vmatmul.mubr.bf16.gmra.mrb[0].mxu0 %v484
        %v594 = vpop.f32.mrb[0].mxu0
        %v595 = vadd.f32 0.0, %v594
        %v596 = vpop.f32.mrb[0].mxu0
        %v597 = vadd.f32 0.0, %v596
        %v598 = vpop.f32.mrb[0].mxu0
        %v599 = vadd.f32 0.0, %v598
        %v600 = vpop.f32.mrb[0].mxu0
        %v601 = vadd.f32 0.0, %v600
        %602 = vmatprep.mubr.bf16.mxu0 0
        %603 = vmatmul.mubr.bf16.gmra.mrb[0].mxu0 %v487
        %v604 = vpop.f32.mrb[0].mxu0
        %v605 = vadd.f32 0.0, %v604
        %v606 = vpop.f32.mrb[0].mxu0
        %v607 = vadd.f32 0.0, %v606
        %v608 = vpop.f32.mrb[0].mxu0
        %v609 = vadd.f32 0.0, %v608
        %v610 = vpop.f32.mrb[0].mxu0
        %v611 = vadd.f32 0.0, %v610
        %612 = vmatprep.mubr.bf16.mxu0 0
        %613 = vmatmul.mubr.bf16.gmra.mrb[0].mxu0 %v490
        %v614 = vpop.f32.mrb[0].mxu0
        %v615 = vadd.f32 0.0, %v614
        %v616 = vpop.f32.mrb[0].mxu0
        %v617 = vadd.f32 0.0, %v616
        %v618 = vpop.f32.mrb[0].mxu0
        %v619 = vadd.f32 0.0, %v618
        %v620 = vpop.f32.mrb[0].mxu0
        %v621 = vadd.f32 0.0, %v620
        %622 = vmatprep.mubr.bf16.mxu0 0
        %623 = vmatmul.mubr.bf16.gmra.mrb[0].mxu0 %v493
        %v624 = vpop.f32.mrb[0].mxu0
        %v625 = vadd.f32 0.0, %v624
        %v626 = vpop.f32.mrb[0].mxu0
        %v627 = vadd.f32 0.0, %v626
        %v628 = vpop.f32.mrb[0].mxu0
        %v629 = vadd.f32 0.0, %v628
        %v630 = vpop.f32.mrb[0].mxu0
        %v631 = vadd.f32 0.0, %v630
        %632 = vmatprep.mubr.bf16.mxu0 0
        %633 = vmatmul.mubr.bf16.gmra.mrb[0].mxu0 %v496
        %v634 = vpop.f32.mrb[0].mxu0
        %v635 = vadd.f32 0.0, %v634
        %v636 = vpop.f32.mrb[0].mxu0
        %v637 = vadd.f32 0.0, %v636
        %v638 = vpop.f32.mrb[0].mxu0
        %v639 = vadd.f32 0.0, %v638
        %v640 = vpop.f32.mrb[0].mxu0
        %v641 = vadd.f32 0.0, %v640
        %642 = vmatprep.mubr.bf16.mxu0 0
        %643 = vmatmul.mubr.bf16.gmra.mrb[0].mxu0 %v499
        %v644 = vpop.f32.mrb[0].mxu0
        %v645 = vadd.f32 0.0, %v644
        %v646 = vpop.f32.mrb[0].mxu0
        %v647 = vadd.f32 0.0, %v646
        %v648 = vpop.f32.mrb[0].mxu0
        %v649 = vadd.f32 0.0, %v648
        %v650 = vpop.f32.mrb[0].mxu0
        %v651 = vadd.f32 0.0, %v650
        %652 = vmatprep.mubr.bf16.mxu0 0
        %653 = vmatmul.mubr.bf16.gmra.mrb[0].mxu0 %v502
        %v654 = vpop.f32.mrb[0].mxu0
        %v655 = vadd.f32 0.0, %v654
        %v656 = vpop.f32.mrb[0].mxu0
        %v657 = vadd.f32 0.0, %v656
        %v658 = vpop.f32.mrb[0].mxu0
        %v659 = vadd.f32 0.0, %v658
        %v660 = vpop.f32.mrb[0].mxu0
        %v661 = vadd.f32 0.0, %v660
        %662 = vmatprep.mubr.bf16.mxu0 0
        %663 = vmatmul.mubr.bf16.gmra.mrb[0].mxu0 %v505
        %v664 = vpop.f32.mrb[0].mxu0
        %v665 = vadd.f32 0.0, %v664
        %v666 = vpop.f32.mrb[0].mxu0
        %v667 = vadd.f32 0.0, %v666
        %v668 = vpop.f32.mrb[0].mxu0
        %v669 = vadd.f32 0.0, %v668
        %v670 = vpop.f32.mrb[0].mxu0
        %v671 = vadd.f32 0.0, %v670
        %672 = vmatprep.mubr.bf16.mxu0 0
        %673 = vmatmul.mubr.bf16.gmra.mrb[0].mxu0 %v508
        %v674 = vpop.f32.mrb[0].mxu0
        %v675 = vadd.f32 0.0, %v674
        %v676 = vpop.f32.mrb[0].mxu0
        %v677 = vadd.f32 0.0, %v676
        %v678 = vpop.f32.mrb[0].mxu0
        %v679 = vadd.f32 0.0, %v678
        %v680 = vpop.f32.mrb[0].mxu0
        %v681 = vadd.f32 0.0, %v680
        %682 = vdwg.mxu0
        %s683 = sld [smem:[#allocation2 + %s30]]
        %v684 = vstv %s683
        %v685 = vmul.f32 %v545, %v684
        %v686 = vmul.f32 %v547, %v684
        %v687 = vmul.f32 %v549, %v684
        %v688 = vmul.f32 %v551, %v684
        %v689 = vmul.f32 %v555, %v684
        %v690 = vmul.f32 %v557, %v684
        %v691 = vmul.f32 %v559, %v684
        %v692 = vmul.f32 %v561, %v684
        %v693 = vmul.f32 %v565, %v684
        %v694 = vmul.f32 %v567, %v684
        %v695 = vmul.f32 %v569, %v684
        %v696 = vmul.f32 %v571, %v684
        %v697 = vmul.f32 %v575, %v684
        %v698 = vmul.f32 %v577, %v684
        %v699 = vmul.f32 %v579, %v684
        %v700 = vmul.f32 %v581, %v684
        %v701 = vmul.f32 %v585, %v684
        %v702 = vmul.f32 %v587, %v684
        %v703 = vmul.f32 %v589, %v684
        %v704 = vmul.f32 %v591, %v684
        %v705 = vmul.f32 %v595, %v684
        %v706 = vmul.f32 %v597, %v684
        %v707 = vmul.f32 %v599, %v684
        %v708 = vmul.f32 %v601, %v684
        %v709 = vmul.f32 %v605, %v684
        %v710 = vmul.f32 %v607, %v684
        %v711 = vmul.f32 %v609, %v684
        %v712 = vmul.f32 %v611, %v684
        %v713 = vmul.f32 %v615, %v684
        %v714 = vmul.f32 %v617, %v684
        %v715 = vmul.f32 %v619, %v684
        %v716 = vmul.f32 %v621, %v684
        %v717 = vmul.f32 %v625, %v684
        %v718 = vmul.f32 %v627, %v684
        %v719 = vmul.f32 %v629, %v684
        %v720 = vmul.f32 %v631, %v684
        %v721 = vmul.f32 %v635, %v684
        %v722 = vmul.f32 %v637, %v684
        %v723 = vmul.f32 %v639, %v684
        %v724 = vmul.f32 %v641, %v684
        %v725 = vmul.f32 %v645, %v684
        %v726 = vmul.f32 %v647, %v684
        %v727 = vmul.f32 %v649, %v684
        %v728 = vmul.f32 %v651, %v684
        %v729 = vmul.f32 %v655, %v684
        %v730 = vmul.f32 %v657, %v684
        %v731 = vmul.f32 %v659, %v684
        %v732 = vmul.f32 %v661, %v684
        %v733 = vmul.f32 %v665, %v684
        %v734 = vmul.f32 %v667, %v684
        %v735 = vmul.f32 %v669, %v684
        %v736 = vmul.f32 %v671, %v684
        %v737 = vmul.f32 %v675, %v684
        %v738 = vmul.f32 %v677, %v684
        %v739 = vmul.f32 %v679, %v684
        %v740 = vmul.f32 %v681, %v684
        %s741 = sld [smem:[#allocation6 + %s30]]
        %v742 = vstv %s741
        %v743 = vadd.f32 %v685, %v742
        %v744 = vadd.f32 %v686, %v742
        %v745 = vadd.f32 %v687, %v742
        %v746 = vadd.f32 %v688, %v742
        %v747 = vadd.f32 %v689, %v742
        %v748 = vadd.f32 %v690, %v742
        %v749 = vadd.f32 %v691, %v742
        %v750 = vadd.f32 %v692, %v742
        %v751 = vadd.f32 %v693, %v742
        %v752 = vadd.f32 %v694, %v742
        %v753 = vadd.f32 %v695, %v742
        %v754 = vadd.f32 %v696, %v742
        %v755 = vadd.f32 %v697, %v742
        %v756 = vadd.f32 %v698, %v742
        %v757 = vadd.f32 %v699, %v742
        %v758 = vadd.f32 %v700, %v742
        %v759 = vadd.f32 %v701, %v742
        %v760 = vadd.f32 %v702, %v742
        %v761 = vadd.f32 %v703, %v742
        %v762 = vadd.f32 %v704, %v742
        %v763 = vadd.f32 %v705, %v742
        %v764 = vadd.f32 %v706, %v742
        %v765 = vadd.f32 %v707, %v742
        %v766 = vadd.f32 %v708, %v742
        %v767 = vadd.f32 %v709, %v742
        %v768 = vadd.f32 %v710, %v742
        %v769 = vadd.f32 %v711, %v742
        %v770 = vadd.f32 %v712, %v742
        %v771 = vadd.f32 %v713, %v742
        %v772 = vadd.f32 %v714, %v742
        %v773 = vadd.f32 %v715, %v742
        %v774 = vadd.f32 %v716, %v742
        %v775 = vadd.f32 %v717, %v742
        %v776 = vadd.f32 %v718, %v742
        %v777 = vadd.f32 %v719, %v742
        %v778 = vadd.f32 %v720, %v742
        %v779 = vadd.f32 %v721, %v742
        %v780 = vadd.f32 %v722, %v742
        %v781 = vadd.f32 %v723, %v742
        %v782 = vadd.f32 %v724, %v742
        %v783 = vadd.f32 %v725, %v742
        %v784 = vadd.f32 %v726, %v742
        %v785 = vadd.f32 %v727, %v742
        %v786 = vadd.f32 %v728, %v742
        %v787 = vadd.f32 %v729, %v742
        %v788 = vadd.f32 %v730, %v742
        %v789 = vadd.f32 %v731, %v742
        %v790 = vadd.f32 %v732, %v742
        %v791 = vadd.f32 %v733, %v742
        %v792 = vadd.f32 %v734, %v742
        %v793 = vadd.f32 %v735, %v742
        %v794 = vadd.f32 %v736, %v742
        %v795 = vadd.f32 %v737, %v742
        %v796 = vadd.f32 %v738, %v742
        %v797 = vadd.f32 %v739, %v742
        %v798 = vadd.f32 %v740, %v742
        %799 = vst [vmem:[%s298] sm:$0xff] %v743
        %vm800 = vcmask 785408
        %801 = vst.msk [vmem:[%s298 + $0x8] sm:$0xff] %vm800, %v744
        %802 = vst [vmem:[%s298 + $0x10] sm:$0xff] %v745
        %803 = vst.msk [vmem:[%s298 + $0x18] sm:$0xff] %vm800, %v746
        %804 = vst [vmem:[%s298 + $0x20] sm:$0xff] %v747
        %805 = vst.msk [vmem:[%s298 + $0x28] sm:$0xff] %vm800, %v748
        %806 = vst [vmem:[%s298 + $0x30] sm:$0xff] %v749
        %807 = vst.msk [vmem:[%s298 + $0x38] sm:$0xff] %vm800, %v750
        %808 = vst [vmem:[%s298 + $0x40] sm:$0xff] %v751
        %809 = vst.msk [vmem:[%s298 + $0x48] sm:$0xff] %vm800, %v752
        %810 = vst [vmem:[%s298 + $0x50] sm:$0xff] %v753
        %811 = vst.msk [vmem:[%s298 + $0x58] sm:$0xff] %vm800, %v754
        %812 = vst [vmem:[%s298 + $0x60] sm:$0xff] %v755
        %813 = vst.msk [vmem:[%s298 + $0x68] sm:$0xff] %vm800, %v756
        %814 = vst [vmem:[%s298 + $0x70] sm:$0xff] %v757
        %815 = vst.msk [vmem:[%s298 + $0x78] sm:$0xff] %vm800, %v758
        %816 = vst [vmem:[%s298 + $0x80] sm:$0xff] %v759
        %817 = vst.msk [vmem:[%s298 + $0x88] sm:$0xff] %vm800, %v760
        %818 = vst [vmem:[%s298 + $0x90] sm:$0xff] %v761
        %819 = vst.msk [vmem:[%s298 + $0x98] sm:$0xff] %vm800, %v762
        %820 = vst [vmem:[%s298 + $0xa0] sm:$0xff] %v763
        %821 = vst.msk [vmem:[%s298 + $0xa8] sm:$0xff] %vm800, %v764
        %822 = vst [vmem:[%s298 + $0xb0] sm:$0xff] %v765
        %823 = vst.msk [vmem:[%s298 + $0xb8] sm:$0xff] %vm800, %v766
        %824 = vst [vmem:[%s298 + $0xc0] sm:$0xff] %v767
        %825 = vst.msk [vmem:[%s298 + $0xc8] sm:$0xff] %vm800, %v768
        %826 = vst [vmem:[%s298 + $0xd0] sm:$0xff] %v769
        %827 = vst.msk [vmem:[%s298 + $0xd8] sm:$0xff] %vm800, %v770
        %828 = vst [vmem:[%s298 + $0xe0] sm:$0xff] %v771
        %829 = vst.msk [vmem:[%s298 + $0xe8] sm:$0xff] %vm800, %v772
        %830 = vst [vmem:[%s298 + $0xf0] sm:$0xff] %v773
        %831 = vst.msk [vmem:[%s298 + $0xf8] sm:$0xff] %vm800, %v774
        %832 = vst [vmem:[%s298 + $0x100] sm:$0xff] %v775
        %833 = vst.msk [vmem:[%s298 + $0x108] sm:$0xff] %vm800, %v776
        %834 = vst [vmem:[%s298 + $0x110] sm:$0xff] %v777
        %835 = vst.msk [vmem:[%s298 + $0x118] sm:$0xff] %vm800, %v778
        %836 = vst [vmem:[%s298 + $0x120] sm:$0xff] %v779
        %837 = vst.msk [vmem:[%s298 + $0x128] sm:$0xff] %vm800, %v780
        %838 = vst [vmem:[%s298 + $0x130] sm:$0xff] %v781
        %839 = vst.msk [vmem:[%s298 + $0x138] sm:$0xff] %vm800, %v782
        %840 = vst [vmem:[%s298 + $0x140] sm:$0xff] %v783
        %841 = vst.msk [vmem:[%s298 + $0x148] sm:$0xff] %vm800, %v784
        %842 = vst [vmem:[%s298 + $0x150] sm:$0xff] %v785
        %843 = vst.msk [vmem:[%s298 + $0x158] sm:$0xff] %vm800, %v786
        %844 = vst [vmem:[%s298 + $0x160] sm:$0xff] %v787
        %845 = vst.msk [vmem:[%s298 + $0x168] sm:$0xff] %vm800, %v788
        %846 = vst [vmem:[%s298 + $0x170] sm:$0xff] %v789
        %847 = vst.msk [vmem:[%s298 + $0x178] sm:$0xff] %vm800, %v790
        %848 = vst [vmem:[%s298 + $0x180] sm:$0xff] %v791
        %849 = vst.msk [vmem:[%s298 + $0x188] sm:$0xff] %vm800, %v792
        %850 = vst [vmem:[%s298 + $0x190] sm:$0xff] %v793
        %851 = vst.msk [vmem:[%s298 + $0x198] sm:$0xff] %vm800, %v794
        %852 = vst [vmem:[%s298 + $0x1a0] sm:$0xff] %v795
        %853 = vst.msk [vmem:[%s298 + $0x1a8] sm:$0xff] %vm800, %v796
        %854 = vst [vmem:[%s298 + $0x1b0] sm:$0xff] %v797
        %855 = vst.msk [vmem:[%s298 + $0x1b8] sm:$0xff] %vm800, %v798
        %s856 = sand.u32 %s159, 1
        %s857 = scalar_lea.sflag [#allocation4], %s856
        %s858 = sand.u32 %s159, 1
        %s859 = smul.addr %s858, 448
        %s860 = scalar_lea.vmem [#allocation11], %s859
        // Predicated region
        $region57: #{tpu_custom_call.1} parent=39 // pred_check
          %p861 = pneg %p169
        $region58: #{tpu_custom_call.1} parent=39 // pred_check_branch
          %863 = sbr.rel (%p861) target = $region60
        $region59: #{tpu_custom_call.1} parent=39 // pred_region
          %s865 = ssub.s32 7168, 7168
          %866 = vsyncadd %s857, %s865
          %s867 = smul.addr %s30, 56
          %s868 = smul.addr %s29, 168
          %s869 = sadd.s32 %s867, %s868
          %s870 = smul.addr %s869, 128
          %s871 = scalar_lea.hbm %s5, %s870
          %s872 = sshll.u32 %s860, 4
          %s873 = int_to_ptr.vmem [resolvable:$true] %s872
          %878 = dma.vmem_to_hbm [thread:$0]  %s873, 7168, %s871, %s857, 256, 256, 16
        $region60: #{tpu_custom_call.1} parent=39 // pred_fallthru
          _
      $region40: #{tpu_custom_call.1} parent=5 // pred_fallthru
        _
      %p879 = scmp.le.s32.totalorder 2, %s20
      // Predicated region
      $region61: #{tpu_custom_call.1} parent=5 // pred_check
        %p880 = pneg %p879
      $region62: #{tpu_custom_call.1} parent=5 // pred_check_branch
        %882 = sbr.rel (%p880) target = $region64
      $region63: #{tpu_custom_call.1} parent=5 // pred_region
        %s883 = ssub.s32 %s20, 2
        // Predicated region
        $region65: #{tpu_custom_call.1} parent=63 // pred_check
          %p884 = pneg %p175
        $region66: #{tpu_custom_call.1} parent=63 // pred_check_branch
          %886 = sbr.rel (%p884) target = $region68
        $region67: #{tpu_custom_call.1} parent=63 // pred_region
          %s887 = sand.u32 %s160, 1
          %s888 = scalar_lea.sflag [#allocation4], %s887
          %s889 = sand.u32 %s160, 1
          %s890 = smul.addr %s889, 448
          %s891 = scalar_lea.vmem [#allocation11], %s890
          %892 = dma.done %s888, 7168
        $region68: #{tpu_custom_call.1} parent=63 // pred_fallthru
          _
      $region64: #{tpu_custom_call.1} parent=5 // pred_fallthru
        _
    $region6: #{tpu_custom_call.1} parent=1 // loop_footer
      %s24 = sadd.s32 1, %s20
    $region7: #{tpu_custom_call.1} parent=1 // loop_footer_branch
      %19 = sbr.rel target = $region3
    $region8: #{tpu_custom_call.1} parent=1 // loop_exit
      _
    %893 = vsyncpa [#allocation3], 1
    %s894 = scalar_lea.sflag [#allocation3], 1
    %895 = vsyncpa %s894, 1
    %896 = vsyncpa [#allocation10], 1
    %897 = vsyncpa [#allocation4], 1
    %s898 = scalar_lea.sflag [#allocation4], 1
    %899 = vsyncpa %s898, 1
    %900 = vsyncpa [#allocation5], 1
    %s901 = scalar_lea.sflag [#allocation5], 1
    %902 = vsyncpa %s901, 1
    %903 = vsyncpa [#allocation7], 1

</llo_original>
